<compile_context>
chip_gen: v7x
topology: tpu7x:2x2x1
jax: 0.10.0
libtpu: 0.0.40
codegen_flags: <defaults>
</compile_context>

<pallas_src>
import functools

import jax
import jax.numpy as jnp
from jax.experimental import pallas as pl
from jax.experimental.pallas import tpu as pltpu


def _nfivae_fwd_kernel(
    x_ref, y_ref, e_ref, eps_ref,            # [10,BT] [1,BT] [4,BT] [L,BT]
    enc1_ref, enc2_ref, dec1_ref, dec2_ref,  # packed [out, in+1], bias = last col
    out_ref,                                 # [3L+10, BT] = [mu; sigma; z; px_loc]
):
    L = eps_ref.shape[0]
    dx = x_ref.shape[0]
    de = e_ref.shape[0]

    # ---- encoder layer 1: Linear(15->6), evaluated as Wx@x + Wy*y + We@e + b
    #      (no xye concat ever materialized)
    w1 = enc1_ref[...]                                        # [6, 16]
    h = jnp.dot(w1[:, :dx], x_ref[...], preferred_element_type=jnp.float32)
    h = h + w1[:, dx:dx + 1] * y_ref[...]                     # rank-1 -> broadcast FMA
    h = h + jnp.dot(w1[:, dx + 1:dx + 1 + de], e_ref[...],
                    preferred_element_type=jnp.float32)
    h = h + w1[:, dx + 1 + de:]                               # bias, broadcast over lanes
    h = jnp.maximum(h, 0.0)

    # ---- encoder layer 2: Linear(6->2L)
    w2 = enc2_ref[...]                                        # [2L, 7]
    hx = jnp.dot(w2[:, :-1], h, preferred_element_type=jnp.float32) + w2[:, -1:]

    mu = hx[:L, :]
    sigma = jnp.exp(hx[L:, :])                                # EUP op (free slot)
    z = mu + sigma * eps_ref[...]                             # reparameterized sample

    # ---- decoder: Linear(L->6) -> ReLU -> Linear(6->10)
    wd1 = dec1_ref[...]                                       # [6, L+1]
    hd = jnp.dot(wd1[:, :-1], z, preferred_element_type=jnp.float32) + wd1[:, -1:]
    hd = jnp.maximum(hd, 0.0)
    wd2 = dec2_ref[...]                                       # [10, 7]
    px_loc = jnp.dot(wd2[:, :-1], hd, preferred_element_type=jnp.float32) + wd2[:, -1:]

    # ---- single lane-dense packed output stream
    out_ref[0:L, :] = mu
    out_ref[L:2 * L, :] = sigma
    out_ref[2 * L:3 * L, :] = z
    out_ref[3 * L:, :] = px_loc


def nfivae_forward(x, y, e, eps, packed_params, *, block_b=2048):
    """Pallas-backed forward of NFiVAE_synth.

    x/y/e/eps use the torch [batch, features] layout; eps is the rsample noise.
    Returns {'px': {'loc', 'scale'}, 'qz': {'mu', 'sigma'}, 'z'}.
    """
    B = x.shape[0]
    L = eps.shape[1]
    dx, dy, de = x.shape[1], y.shape[1], e.shape[1]
    W = 3 * L + 10

    # Feature-major (transposed) layout: batch sits on the 128-lane axis.
    xT = x.astype(jnp.float32).T
    yT = y.astype(jnp.float32).T
    eT = e.astype(jnp.float32).T
    epsT = eps.astype(jnp.float32).T

    # Batch tiling: single full-extent block if B fits, else pad to a multiple
    # of block_b (block_b is a multiple of 256 -> MXU/lane aligned on v5e/v6e/v7x).
    if B > block_b:
        BT = block_b
        Bp = pl.cdiv(B, BT) * BT
        if Bp != B:
            pad = ((0, 0), (0, Bp - B))
            xT, yT, eT, epsT = [jnp.pad(a, pad) for a in (xT, yT, eT, epsT)]
    else:
        BT, Bp = B, B

    def data_spec(rows):
        return pl.BlockSpec((rows, BT), lambda i: (0, i))

    def param_spec(p):
        # Constant index_map: block index never changes -> DMA'd once, resident.
        return pl.BlockSpec(p.shape, lambda i: (0, 0))

    enc1 = packed_params["enc1"]
    enc2 = packed_params["enc2"]
    dec1 = packed_params["dec1"]
    dec2 = packed_params["dec2"]

    outT = pl.pallas_call(
        _nfivae_fwd_kernel,
        out_shape=jax.ShapeDtypeStruct((W, Bp), jnp.float32),
        grid=(Bp // BT,),
        in_specs=[
            data_spec(dx), data_spec(dy), data_spec(de), data_spec(L),
            param_spec(enc1), param_spec(enc2), param_spec(dec1), param_spec(dec2),
        ],
        out_specs=pl.BlockSpec((W, BT), lambda i: (0, i)),
        compiler_params=pltpu.CompilerParams(
            dimension_semantics=("parallel",),   # v7x: both TensorCores split batch
        ),
    )(xT, yT, eT, epsT, enc1, enc2, dec1, dec2)

    out = outT.T[:B]                              # back to [B, 3L+10]
    mu = out[:, :L]
    sigma = out[:, L:2 * L]
    z = out[:, 2 * L:3 * L]
    px_loc = out[:, 3 * L:]

    return {
        "px": {"loc": px_loc, "scale": jnp.asarray(0.1, jnp.float32)},  # broadcasts
        "qz": {"mu": mu, "sigma": sigma},
        "z": z,
    }


def init_params(key, latent_features):
    """torch.nn.Linear-style init: U(-1/sqrt(fan_in), +), torch layout W:[out,in]."""
    def linear(key, fan_in, fan_out):
        kw, kb = jax.random.split(key)
        bound = float(fan_in) ** -0.5
        w = jax.random.uniform(kw, (fan_out, fan_in), jnp.float32, -bound, bound)
        b = jax.random.uniform(kb, (fan_out,), jnp.float32, -bound, bound)
        return w, b

    keys = jax.random.split(key, 4)
    L = latent_features
    we1, be1 = linear(keys[0], 15, 6)       # NonLinearEncoder layer 1
    we2, be2 = linear(keys[1], 6, 2 * L)    # NonLinearEncoder layer 2
    wd1, bd1 = linear(keys[2], L, 6)        # NonLinearDecoder layer 1
    wd2, bd2 = linear(keys[3], 6, 10)       # NonLinearDecoder layer 2
    # TODO(synk): TNN_prior / LambdaNN_prior / Lambdafnl_prior are only used in
    # VariationalInference (autograd through the prior), not in forward().
    return {"we1": we1, "be1": be1, "we2": we2, "be2": be2,
            "wd1": wd1, "bd1": bd1, "wd2": wd2, "bd2": bd2}


def pack_params(p):
    """Pack each layer's torch-layout (W [out,in], b [out]) into one [out, in+1]."""
    def pack(w, b):
        return jnp.concatenate([w, b[:, None]], axis=1).astype(jnp.float32)
    return {
        "enc1": pack(p["we1"], p["be1"]),
        "enc2": pack(p["we2"], p["be2"]),
        "dec1": pack(p["wd1"], p["bd1"]),
        "dec2": pack(p["wd2"], p["bd2"]),
    }


if __name__ == "__main__":
    B = 200              # small demo; with block_b=128 this exercises tiling + padding
    LATENT = 4           # latent_features
    key = jax.random.PRNGKey(0)
    kx, ky, ke, keps, kp = jax.random.split(key, 5)

    # input_shape implies x has 10 features (decoder out = 10, encoder in = 15)
    x = jax.random.normal(kx, (B, 10), jnp.float32)
    y = jax.random.normal(ky, (B, 1), jnp.float32)          # label: 1 feature
    e = jax.random.normal(ke, (B, 4), jnp.float32)          # env:   4 features
    eps = jax.random.normal(keps, (B, LATENT), jnp.float32)  # rsample noise

    params = init_params(kp, LATENT)
    packed = pack_params(params)

    fwd = jax.jit(functools.partial(nfivae_forward, block_b=128))
    out = fwd(x, y, e, eps, packed)
    jax.block_until_ready(out)

    # pure-JAX reference (torch semantics: y = x @ W.T + b)
    xye = jnp.concatenate([x, y, e], axis=1)
    h = jnp.maximum(xye @ params["we1"].T + params["be1"], 0.0)
    hx = h @ params["we2"].T + params["be2"]
    mu_r, logsig_r = hx[:, :LATENT], hx[:, LATENT:]
    z_r = mu_r + jnp.exp(logsig_r) * eps
    hd = jnp.maximum(z_r @ params["wd1"].T + params["bd1"], 0.0)
    pxloc_r = hd @ params["wd2"].T + params["bd2"]

    assert jnp.allclose(out["qz"]["mu"], mu_r, atol=1e-5)
    assert jnp.allclose(out["qz"]["sigma"], jnp.exp(logsig_r), atol=1e-5)
    assert jnp.allclose(out["z"], z_r, atol=1e-5)
    assert jnp.allclose(out["px"]["loc"], pxloc_r, atol=1e-5)
    assert abs(float(out["px"]["scale"]) - 0.1) < 1e-6

    print("KERNEL_OK")
</pallas_src>

<mosaic_0001>
module attributes {stable_mosaic.version = 11 : i64} {
  func.func @_nfivae_fwd_kernel(%arg0: i32, %arg1: memref<10x128xf32, #tpu.memory_space<vmem>>, %arg2: memref<1x128xf32, #tpu.memory_space<vmem>>, %arg3: memref<4x128xf32, #tpu.memory_space<vmem>>, %arg4: memref<4x128xf32, #tpu.memory_space<vmem>>, %arg5: memref<6x16xf32, #tpu.memory_space<vmem>>, %arg6: memref<8x7xf32, #tpu.memory_space<vmem>>, %arg7: memref<6x5xf32, #tpu.memory_space<vmem>>, %arg8: memref<10x7xf32, #tpu.memory_space<vmem>>, %arg9: memref<22x128xf32, #tpu.memory_space<vmem>>) attributes {dimension_semantics = [#tpu.dimension_semantics<parallel>], iteration_bounds = array<i64: 2>, scalar_prefetch = 0 : i64, scratch_operands = 0 : i64, tpu.core_type = #tpu.core_type<tc>, window_params = [{transform_indices = @transform_0, window_bounds = array<i64: 10, 128>}, {transform_indices = @transform_1, window_bounds = array<i64: 1, 128>}, {transform_indices = @transform_2, window_bounds = array<i64: 4, 128>}, {transform_indices = @transform_3, window_bounds = array<i64: 4, 128>}, {pipeline_mode = #tpu.pipeline_mode<synchronous>, transform_indices = @transform_4, window_bounds = array<i64: 6, 16>}, {pipeline_mode = #tpu.pipeline_mode<synchronous>, transform_indices = @transform_5, window_bounds = array<i64: 8, 7>}, {pipeline_mode = #tpu.pipeline_mode<synchronous>, transform_indices = @transform_6, window_bounds = array<i64: 6, 5>}, {pipeline_mode = #tpu.pipeline_mode<synchronous>, transform_indices = @transform_7, window_bounds = array<i64: 10, 7>}, {transform_indices = @transform_8, window_bounds = array<i64: 22, 128>}]} {
    %c0 = arith.constant 0 : index
    %c0_0 = arith.constant 0 : index
    %0 = vector.load %arg5[%c0, %c0_0] : memref<6x16xf32, #tpu.memory_space<vmem>>, vector<6x16xf32>
    %1 = vector.extract_strided_slice %0 {offsets = [0, 0], sizes = [6, 10], strides = [1, 1]} : vector<6x16xf32> to vector<6x10xf32>
    %c0_1 = arith.constant 0 : index
    %c0_2 = arith.constant 0 : index
    %2 = vector.load %arg1[%c0_1, %c0_2] : memref<10x128xf32, #tpu.memory_space<vmem>>, vector<10x128xf32>
    %cst = arith.constant dense<0.000000e+00> : vector<6x128xf32>
    %3 = tpu.matmul %1, %2, %cst {dimension_numbers = #tpu.dot_dimension_numbers<[1], [0], [0], [1], [0, 0, 1, 1], [], []>} : vector<6x10xf32>, vector<10x128xf32>, vector<6x128xf32> -> vector<6x128xf32>
    %4 = vector.extract_strided_slice %0 {offsets = [0, 10], sizes = [6, 1], strides = [1, 1]} : vector<6x16xf32> to vector<6x1xf32>
    %c0_3 = arith.constant 0 : index
    %c0_4 = arith.constant 0 : index
    %5 = vector.load %arg2[%c0_3, %c0_4] : memref<1x128xf32, #tpu.memory_space<vmem>>, vector<1x128xf32>
    %6 = vector.broadcast %4 : vector<6x1xf32> to vector<6x128xf32>
    %7 = vector.broadcast %5 : vector<1x128xf32> to vector<6x128xf32>
    %8 = arith.mulf %6, %7 : vector<6x128xf32>
    %9 = arith.addf %3, %8 : vector<6x128xf32>
    %10 = vector.extract_strided_slice %0 {offsets = [0, 11], sizes = [6, 4], strides = [1, 1]} : vector<6x16xf32> to vector<6x4xf32>
    %c0_5 = arith.constant 0 : index
    %c0_6 = arith.constant 0 : index
    %11 = vector.load %arg3[%c0_5, %c0_6] : memref<4x128xf32, #tpu.memory_space<vmem>>, vector<4x128xf32>
    %cst_7 = arith.constant dense<0.000000e+00> : vector<6x128xf32>
    %12 = tpu.matmul %10, %11, %cst_7 {dimension_numbers = #tpu.dot_dimension_numbers<[1], [0], [0], [1], [0, 0, 1, 1], [], []>} : vector<6x4xf32>, vector<4x128xf32>, vector<6x128xf32> -> vector<6x128xf32>
    %13 = arith.addf %9, %12 : vector<6x128xf32>
    %14 = vector.extract_strided_slice %0 {offsets = [0, 15], sizes = [6, 1], strides = [1, 1]} : vector<6x16xf32> to vector<6x1xf32>
    %15 = vector.broadcast %14 : vector<6x1xf32> to vector<6x128xf32>
    %16 = arith.addf %13, %15 : vector<6x128xf32>
    %cst_8 = arith.constant 0.000000e+00 : f32
    %17 = vector.broadcast %cst_8 : f32 to vector<6x128xf32>
    %18 = arith.maximumf %16, %17 : vector<6x128xf32>
    %c0_9 = arith.constant 0 : index
    %c0_10 = arith.constant 0 : index
    %19 = vector.load %arg6[%c0_9, %c0_10] : memref<8x7xf32, #tpu.memory_space<vmem>>, vector<8x7xf32>
    %20 = vector.extract_strided_slice %19 {offsets = [0, 0], sizes = [8, 6], strides = [1, 1]} : vector<8x7xf32> to vector<8x6xf32>
    %cst_11 = arith.constant dense<0.000000e+00> : vector<8x128xf32>
    %21 = tpu.matmul %20, %18, %cst_11 {dimension_numbers = #tpu.dot_dimension_numbers<[1], [0], [0], [1], [0, 0, 1, 1], [], []>} : vector<8x6xf32>, vector<6x128xf32>, vector<8x128xf32> -> vector<8x128xf32>
    %22 = vector.extract_strided_slice %19 {offsets = [0, 6], sizes = [8, 1], strides = [1, 1]} : vector<8x7xf32> to vector<8x1xf32>
    %23 = vector.broadcast %22 : vector<8x1xf32> to vector<8x128xf32>
    %24 = arith.addf %21, %23 : vector<8x128xf32>
    %25 = vector.extract_strided_slice %24 {offsets = [0, 0], sizes = [4, 128], strides = [1, 1]} : vector<8x128xf32> to vector<4x128xf32>
    %26 = vector.extract_strided_slice %24 {offsets = [4, 0], sizes = [4, 128], strides = [1, 1]} : vector<8x128xf32> to vector<4x128xf32>
    %27 = math.exp %26 : vector<4x128xf32>
    %c0_12 = arith.constant 0 : index
    %c0_13 = arith.constant 0 : index
    %28 = vector.load %arg4[%c0_12, %c0_13] : memref<4x128xf32, #tpu.memory_space<vmem>>, vector<4x128xf32>
    %29 = arith.mulf %27, %28 : vector<4x128xf32>
    %30 = arith.addf %25, %29 : vector<4x128xf32>
    %c0_14 = arith.constant 0 : index
    %c0_15 = arith.constant 0 : index
    %31 = vector.load %arg7[%c0_14, %c0_15] : memref<6x5xf32, #tpu.memory_space<vmem>>, vector<6x5xf32>
    %32 = vector.extract_strided_slice %31 {offsets = [0, 0], sizes = [6, 4], strides = [1, 1]} : vector<6x5xf32> to vector<6x4xf32>
    %cst_16 = arith.constant dense<0.000000e+00> : vector<6x128xf32>
    %33 = tpu.matmul %32, %30, %cst_16 {dimension_numbers = #tpu.dot_dimension_numbers<[1], [0], [0], [1], [0, 0, 1, 1], [], []>} : vector<6x4xf32>, vector<4x128xf32>, vector<6x128xf32> -> vector<6x128xf32>
    %34 = vector.extract_strided_slice %31 {offsets = [0, 4], sizes = [6, 1], strides = [1, 1]} : vector<6x5xf32> to vector<6x1xf32>
    %35 = vector.broadcast %34 : vector<6x1xf32> to vector<6x128xf32>
    %36 = arith.addf %33, %35 : vector<6x128xf32>
    %cst_17 = arith.constant 0.000000e+00 : f32
    %37 = vector.broadcast %cst_17 : f32 to vector<6x128xf32>
    %38 = arith.maximumf %36, %37 : vector<6x128xf32>
    %c0_18 = arith.constant 0 : index
    %c0_19 = arith.constant 0 : index
    %39 = vector.load %arg8[%c0_18, %c0_19] : memref<10x7xf32, #tpu.memory_space<vmem>>, vector<10x7xf32>
    %40 = vector.extract_strided_slice %39 {offsets = [0, 0], sizes = [10, 6], strides = [1, 1]} : vector<10x7xf32> to vector<10x6xf32>
    %cst_20 = arith.constant dense<0.000000e+00> : vector<10x128xf32>
    %41 = tpu.matmul %40, %38, %cst_20 {dimension_numbers = #tpu.dot_dimension_numbers<[1], [0], [0], [1], [0, 0, 1, 1], [], []>} : vector<10x6xf32>, vector<6x128xf32>, vector<10x128xf32> -> vector<10x128xf32>
    %42 = vector.extract_strided_slice %39 {offsets = [0, 6], sizes = [10, 1], strides = [1, 1]} : vector<10x7xf32> to vector<10x1xf32>
    %43 = vector.broadcast %42 : vector<10x1xf32> to vector<10x128xf32>
    %44 = arith.addf %41, %43 : vector<10x128xf32>
    %c0_21 = arith.constant 0 : index
    %c0_22 = arith.constant 0 : index
    %45 = vector.load %arg9[%c0_21, %c0_22] : memref<22x128xf32, #tpu.memory_space<vmem>>, vector<4x128xf32>
    tpu.vector_store %arg9[%c0_21, %c0_22], %25 {strides = array<i32>} : memref<22x128xf32, #tpu.memory_space<vmem>>, vector<4x128xf32>,
    %c4 = arith.constant 4 : index
    %c0_23 = arith.constant 0 : index
    %46 = vector.load %arg9[%c4, %c0_23] : memref<22x128xf32, #tpu.memory_space<vmem>>, vector<4x128xf32>
    tpu.vector_store %arg9[%c4, %c0_23], %27 {strides = array<i32>} : memref<22x128xf32, #tpu.memory_space<vmem>>, vector<4x128xf32>,
    %c8 = arith.constant 8 : index
    %c0_24 = arith.constant 0 : index
    %47 = vector.load %arg9[%c8, %c0_24] : memref<22x128xf32, #tpu.memory_space<vmem>>, vector<4x128xf32>
    tpu.vector_store %arg9[%c8, %c0_24], %30 {strides = array<i32>} : memref<22x128xf32, #tpu.memory_space<vmem>>, vector<4x128xf32>,
    %c12 = arith.constant 12 : index
    %c0_25 = arith.constant 0 : index
    %48 = vector.load %arg9[%c12, %c0_25] : memref<22x128xf32, #tpu.memory_space<vmem>>, vector<10x128xf32>
    tpu.vector_store %arg9[%c12, %c0_25], %44 {strides = array<i32>} : memref<22x128xf32, #tpu.memory_space<vmem>>, vector<10x128xf32>,
    return
  }
  func.func @transform_0(%arg0: i32) -> (i32, i32) {
    %c0_i32 = arith.constant 0 : i32
    %c0_i32_0 = arith.constant 0 : i32
    return %c0_i32, %arg0 : i32, i32
  }
  func.func @transform_1(%arg0: i32) -> (i32, i32) {
    %c0_i32 = arith.constant 0 : i32
    %c0_i32_0 = arith.constant 0 : i32
    return %c0_i32, %arg0 : i32, i32
  }
  func.func @transform_2(%arg0: i32) -> (i32, i32) {
    %c0_i32 = arith.constant 0 : i32
    %c0_i32_0 = arith.constant 0 : i32
    return %c0_i32, %arg0 : i32, i32
  }
  func.func @transform_3(%arg0: i32) -> (i32, i32) {
    %c0_i32 = arith.constant 0 : i32
    %c0_i32_0 = arith.constant 0 : i32
    return %c0_i32, %arg0 : i32, i32
  }
  func.func @transform_4(%arg0: i32) -> (i32, i32) {
    %c0_i32 = arith.constant 0 : i32
    %c0_i32_0 = arith.constant 0 : i32
    %c0_i32_1 = arith.constant 0 : i32
    return %c0_i32, %c0_i32_0 : i32, i32
  }
  func.func @transform_5(%arg0: i32) -> (i32, i32) {
    %c0_i32 = arith.constant 0 : i32
    %c0_i32_0 = arith.constant 0 : i32
    %c0_i32_1 = arith.constant 0 : i32
    return %c0_i32, %c0_i32_0 : i32, i32
  }
  func.func @transform_6(%arg0: i32) -> (i32, i32) {
    %c0_i32 = arith.constant 0 : i32
    %c0_i32_0 = arith.constant 0 : i32
    %c0_i32_1 = arith.constant 0 : i32
    return %c0_i32, %c0_i32_0 : i32, i32
  }
  func.func @transform_7(%arg0: i32) -> (i32, i32) {
    %c0_i32 = arith.constant 0 : i32
    %c0_i32_0 = arith.constant 0 : i32
    %c0_i32_1 = arith.constant 0 : i32
    return %c0_i32, %c0_i32_0 : i32, i32
  }
  func.func @transform_8(%arg0: i32) -> (i32, i32) {
    %c0_i32 = arith.constant 0 : i32
    %c0_i32_0 = arith.constant 0 : i32
    return %c0_i32, %arg0 : i32, i32
  }
}

</mosaic_0001>

<llo_original>
// kernel: nfivae_forward.1
$region0: #{nfivae_forward.1}
  #allocation0 [shape = 'u32[]', space=smem, size = 0x4, offset = 0x4, fixed_abs, tag = 'smem constant byte address 0x4 - core index']
  #allocation1 [shape = 'u32[144,128]{1,0:T(1,128)}', space=vmem, size = 0x12000, scoped, tag = 'internal scratch']
  %s0 = inlined_call_operand.vmem [shape: f32[10,256], index: 0, kind: input, shape index: {}]
  %s1 = inlined_call_operand.vmem [shape: f32[1,256], index: 1, kind: input, shape index: {}]
  %s2 = inlined_call_operand.vmem [shape: f32[4,256], index: 2, kind: input, shape index: {}]
  %s3 = inlined_call_operand.vmem [shape: f32[4,256], index: 3, kind: input, shape index: {}]
  %s4 = inlined_call_operand.vmem [shape: f32[6,16], index: 4, kind: input, shape index: {}]
  %s5 = inlined_call_operand.vmem [shape: f32[8,7], index: 5, kind: input, shape index: {}]
  %s6 = inlined_call_operand.vmem [shape: f32[6,5], index: 6, kind: input, shape index: {}]
  %s7 = inlined_call_operand.vmem [shape: f32[10,7], index: 7, kind: input, shape index: {}]
  %s8 = inlined_call_operand.vmem [shape: f32[22,256], index: 8, kind: output, shape index: {}]
  %s9 = sld [smem:[#allocation0]]
  $region137: #{nfivae_forward.1} parent=0
    _
  %s11 = ssub.s32 1, %s9
  %s12 = scalar_select 0, %s11, %s9
  $region1: #{nfivae_forward.1} parent=0
    #allocation2 [shape = 'u8[16384]{0}', space=vmem, size = 0x4000, scoped, tag = 'input window, operand 0']
    #allocation3 [shape = 'u8[24576]{0}', space=vmem, size = 0x6000, scoped, tag = 'output window, operand 0']
    loop: start=0, step=1, limit=4
    $region2: #{nfivae_forward.1} parent=1 // loop_pre_header
      _
    $region3: #{nfivae_forward.1} parent=1 // loop_header
      %s14 = sphi 0, %s18
      %p15 = scmp.ge.s32.totalorder %s14, 4
      %s24 = sphi 0, %s26
      %s27 = sphi 0, %s24
      %s28 = sphi 0, %s27
      %s44 = sphi 0, %s28
      %s50 = sphi 0, %s52
      %s53 = sphi 0, %s50
      %s54 = sphi 0, %s53
      %s70 = sphi 0, %s54
      %s76 = sphi 0, %s78
      %s79 = sphi 0, %s76
      %s80 = sphi 0, %s79
      %s96 = sphi 0, %s80
      %s102 = sphi 0, %s104
      %s105 = sphi 0, %s102
      %s106 = sphi 0, %s105
      %s122 = sphi 0, %s106
      %s126 = sphi 0, %s126
      %s128 = sphi 0, %s126
      %s129 = sphi 0, %s128
      %s143 = sphi 0, %s129
      %s147 = sphi 0, %s147
      %s149 = sphi 0, %s147
      %s150 = sphi 0, %s149
      %s164 = sphi 0, %s150
      %s168 = sphi 0, %s168
      %s170 = sphi 0, %s168
      %s171 = sphi 0, %s170
      %s185 = sphi 0, %s171
      %s189 = sphi 0, %s189
      %s191 = sphi 0, %s189
      %s192 = sphi 0, %s191
      %s206 = sphi 0, %s192
      %s212 = sphi 0, %s214
      %s215 = sphi 0, %s212
      %s216 = sphi 0, %s215
      %s232 = sphi 0, %s216
    $region4: #{nfivae_forward.1} parent=1 // loop_header_branch
      %17 = sbr.rel (%p15) target = $region8
    $region5: #{nfivae_forward.1} parent=1 // loop_body
      %s19 = ssub.s32 %s14, 1
      %s20 = ssub.s32 %s14, 2
      %s21 = sadd.s32 %s14, 1
      %s22 = ssub.s32 %s14, %s21
      %p23 = scmp.eq.s32.totalorder %s22, 0
      %s25 = sadd.s32 %s24, 1
      %s26 = scalar_select %p23, %s24, %s25
      %p29 = pneg %p23
      %p30 = scmp.eq.s32.totalorder %s14, 1
      %p31 = por %p29, %p30
      %p32 = scmp.ne.s32.totalorder %s24, %s27
      %p33 = scmp.eq.s32.totalorder %s14, 0
      %p34 = por %p32, %p33
      %p35 = scmp.ne.s32.totalorder %s24, %s27
      %p36 = scmp.eq.s32.totalorder %s19, 1
      %p37 = por %p35, %p36
      %p38 = scmp.ne.s32.totalorder %s27, %s28
      %p39 = scmp.eq.s32.totalorder %s19, 0
      %p40 = por %p38, %p39
      %p41 = scmp.ne.s32.totalorder %s27, %s28
      %p42 = scmp.eq.s32.totalorder %s20, 1
      %p43 = por %p41, %p42
      %p45 = scmp.ne.s32.totalorder %s28, %s44
      %p46 = scmp.eq.s32.totalorder %s20, 0
      %p47 = por %p45, %p46
      %s48 = ssub.s32 %s14, %s21
      %p49 = scmp.eq.s32.totalorder %s48, 0
      %s51 = sadd.s32 %s50, 1
      %s52 = scalar_select %p49, %s50, %s51
      %p55 = pneg %p49
      %p56 = scmp.eq.s32.totalorder %s14, 1
      %p57 = por %p55, %p56
      %p58 = scmp.ne.s32.totalorder %s50, %s53
      %p59 = scmp.eq.s32.totalorder %s14, 0
      %p60 = por %p58, %p59
      %p61 = scmp.ne.s32.totalorder %s50, %s53
      %p62 = scmp.eq.s32.totalorder %s19, 1
      %p63 = por %p61, %p62
      %p64 = scmp.ne.s32.totalorder %s53, %s54
      %p65 = scmp.eq.s32.totalorder %s19, 0
      %p66 = por %p64, %p65
      %p67 = scmp.ne.s32.totalorder %s53, %s54
      %p68 = scmp.eq.s32.totalorder %s20, 1
      %p69 = por %p67, %p68
      %p71 = scmp.ne.s32.totalorder %s54, %s70
      %p72 = scmp.eq.s32.totalorder %s20, 0
      %p73 = por %p71, %p72
      %s74 = ssub.s32 %s14, %s21
      %p75 = scmp.eq.s32.totalorder %s74, 0
      %s77 = sadd.s32 %s76, 1
      %s78 = scalar_select %p75, %s76, %s77
      %p81 = pneg %p75
      %p82 = scmp.eq.s32.totalorder %s14, 1
      %p83 = por %p81, %p82
      %p84 = scmp.ne.s32.totalorder %s76, %s79
      %p85 = scmp.eq.s32.totalorder %s14, 0
      %p86 = por %p84, %p85
      %p87 = scmp.ne.s32.totalorder %s76, %s79
      %p88 = scmp.eq.s32.totalorder %s19, 1
      %p89 = por %p87, %p88
      %p90 = scmp.ne.s32.totalorder %s79, %s80
      %p91 = scmp.eq.s32.totalorder %s19, 0
      %p92 = por %p90, %p91
      %p93 = scmp.ne.s32.totalorder %s79, %s80
      %p94 = scmp.eq.s32.totalorder %s20, 1
      %p95 = por %p93, %p94
      %p97 = scmp.ne.s32.totalorder %s80, %s96
      %p98 = scmp.eq.s32.totalorder %s20, 0
      %p99 = por %p97, %p98
      %s100 = ssub.s32 %s14, %s21
      %p101 = scmp.eq.s32.totalorder %s100, 0
      %s103 = sadd.s32 %s102, 1
      %s104 = scalar_select %p101, %s102, %s103
      %p107 = pneg %p101
      %p108 = scmp.eq.s32.totalorder %s14, 1
      %p109 = por %p107, %p108
      %p110 = scmp.ne.s32.totalorder %s102, %s105
      %p111 = scmp.eq.s32.totalorder %s14, 0
      %p112 = por %p110, %p111
      %p113 = scmp.ne.s32.totalorder %s102, %s105
      %p114 = scmp.eq.s32.totalorder %s19, 1
      %p115 = por %p113, %p114
      %p116 = scmp.ne.s32.totalorder %s105, %s106
      %p117 = scmp.eq.s32.totalorder %s19, 0
      %p118 = por %p116, %p117
      %p119 = scmp.ne.s32.totalorder %s105, %s106
      %p120 = scmp.eq.s32.totalorder %s20, 1
      %p121 = por %p119, %p120
      %p123 = scmp.ne.s32.totalorder %s106, %s122
      %p124 = scmp.eq.s32.totalorder %s20, 0
      %p125 = por %p123, %p124
      %s127 = sadd.s32 %s126, 1
      %p130 = scmp.eq.s32.totalorder %s14, 1
      %p131 = scmp.ne.s32.totalorder %s126, %s128
      %p132 = scmp.eq.s32.totalorder %s14, 0
      %p133 = por %p131, %p132
      %p134 = scmp.ne.s32.totalorder %s126, %s128
      %p135 = scmp.eq.s32.totalorder %s19, 1
      %p136 = por %p134, %p135
      %p137 = scmp.ne.s32.totalorder %s128, %s129
      %p138 = scmp.eq.s32.totalorder %s19, 0
      %p139 = por %p137, %p138
      %p140 = scmp.ne.s32.totalorder %s128, %s129
      %p141 = scmp.eq.s32.totalorder %s20, 1
      %p142 = por %p140, %p141
      %p144 = scmp.ne.s32.totalorder %s129, %s143
      %p145 = scmp.eq.s32.totalorder %s20, 0
      %p146 = por %p144, %p145
      %s148 = sadd.s32 %s147, 1
      %p151 = scmp.eq.s32.totalorder %s14, 1
      %p152 = scmp.ne.s32.totalorder %s147, %s149
      %p153 = scmp.eq.s32.totalorder %s14, 0
      %p154 = por %p152, %p153
      %p155 = scmp.ne.s32.totalorder %s147, %s149
      %p156 = scmp.eq.s32.totalorder %s19, 1
      %p157 = por %p155, %p156
      %p158 = scmp.ne.s32.totalorder %s149, %s150
      %p159 = scmp.eq.s32.totalorder %s19, 0
      %p160 = por %p158, %p159
      %p161 = scmp.ne.s32.totalorder %s149, %s150
      %p162 = scmp.eq.s32.totalorder %s20, 1
      %p163 = por %p161, %p162
      %p165 = scmp.ne.s32.totalorder %s150, %s164
      %p166 = scmp.eq.s32.totalorder %s20, 0
      %p167 = por %p165, %p166
      %s169 = sadd.s32 %s168, 1
      %p172 = scmp.eq.s32.totalorder %s14, 1
      %p173 = scmp.ne.s32.totalorder %s168, %s170
      %p174 = scmp.eq.s32.totalorder %s14, 0
      %p175 = por %p173, %p174
      %p176 = scmp.ne.s32.totalorder %s168, %s170
      %p177 = scmp.eq.s32.totalorder %s19, 1
      %p178 = por %p176, %p177
      %p179 = scmp.ne.s32.totalorder %s170, %s171
      %p180 = scmp.eq.s32.totalorder %s19, 0
      %p181 = por %p179, %p180
      %p182 = scmp.ne.s32.totalorder %s170, %s171
      %p183 = scmp.eq.s32.totalorder %s20, 1
      %p184 = por %p182, %p183
      %p186 = scmp.ne.s32.totalorder %s171, %s185
      %p187 = scmp.eq.s32.totalorder %s20, 0
      %p188 = por %p186, %p187
      %s190 = sadd.s32 %s189, 1
      %p193 = scmp.eq.s32.totalorder %s14, 1
      %p194 = scmp.ne.s32.totalorder %s189, %s191
      %p195 = scmp.eq.s32.totalorder %s14, 0
      %p196 = por %p194, %p195
      %p197 = scmp.ne.s32.totalorder %s189, %s191
      %p198 = scmp.eq.s32.totalorder %s19, 1
      %p199 = por %p197, %p198
      %p200 = scmp.ne.s32.totalorder %s191, %s192
      %p201 = scmp.eq.s32.totalorder %s19, 0
      %p202 = por %p200, %p201
      %p203 = scmp.ne.s32.totalorder %s191, %s192
      %p204 = scmp.eq.s32.totalorder %s20, 1
      %p205 = por %p203, %p204
      %p207 = scmp.ne.s32.totalorder %s192, %s206
      %p208 = scmp.eq.s32.totalorder %s20, 0
      %p209 = por %p207, %p208
      %s210 = ssub.s32 %s14, %s21
      %p211 = scmp.eq.s32.totalorder %s210, 0
      %s213 = sadd.s32 %s212, 1
      %s214 = scalar_select %p211, %s212, %s213
      %p217 = pneg %p211
      %p218 = scmp.eq.s32.totalorder %s14, 1
      %p219 = por %p217, %p218
      %p220 = scmp.ne.s32.totalorder %s212, %s215
      %p221 = scmp.eq.s32.totalorder %s14, 0
      %p222 = por %p220, %p221
      %p223 = scmp.ne.s32.totalorder %s212, %s215
      %p224 = scmp.eq.s32.totalorder %s19, 1
      %p225 = por %p223, %p224
      %p226 = scmp.ne.s32.totalorder %s215, %s216
      %p227 = scmp.eq.s32.totalorder %s19, 0
      %p228 = por %p226, %p227
      %p229 = scmp.ne.s32.totalorder %s215, %s216
      %p230 = scmp.eq.s32.totalorder %s20, 1
      %p231 = por %p229, %p230
      %p233 = scmp.ne.s32.totalorder %s216, %s232
      %p234 = scmp.eq.s32.totalorder %s20, 0
      %p235 = por %p233, %p234
      %p236 = scmp.le.s32.totalorder 1, %s14
      %p237 = scmp.lt.s32.totalorder %s14, 3
      %p238 = pnand %p236, %p237
      %p239 = pneg %p238
      // Predicated region
      $region9: #{nfivae_forward.1} parent=5 // pred_check
        _
      $region10: #{nfivae_forward.1} parent=5 // pred_check_branch
        %241 = sbr.rel (%p238) target = $region12
      $region11: #{nfivae_forward.1} parent=5 // pred_region
        %s242 = ssub.s32 %s14, 1
        // Predicated region
        $region13: #{nfivae_forward.1} parent=11 // pred_check
          %p243 = pneg %p139
        $region14: #{nfivae_forward.1} parent=11 // pred_check_branch
          %245 = sbr.rel (%p243) target = $region16
        $region15: #{nfivae_forward.1} parent=11 // pred_region
          _
        $region16: #{nfivae_forward.1} parent=11 // pred_fallthru
          _
        // Predicated region
        $region17: #{nfivae_forward.1} parent=11 // pred_check
          %p246 = pneg %p160
        $region18: #{nfivae_forward.1} parent=11 // pred_check_branch
          %248 = sbr.rel (%p246) target = $region20
        $region19: #{nfivae_forward.1} parent=11 // pred_region
          _
        $region20: #{nfivae_forward.1} parent=11 // pred_fallthru
          _
        // Predicated region
        $region21: #{nfivae_forward.1} parent=11 // pred_check
          %p249 = pneg %p181
        $region22: #{nfivae_forward.1} parent=11 // pred_check_branch
          %251 = sbr.rel (%p249) target = $region24
        $region23: #{nfivae_forward.1} parent=11 // pred_region
          _
        $region24: #{nfivae_forward.1} parent=11 // pred_fallthru
          _
        // Predicated region
        $region25: #{nfivae_forward.1} parent=11 // pred_check
          %p252 = pneg %p202
        $region26: #{nfivae_forward.1} parent=11 // pred_check_branch
          %254 = sbr.rel (%p252) target = $region28
        $region27: #{nfivae_forward.1} parent=11 // pred_region
          _
        $region28: #{nfivae_forward.1} parent=11 // pred_fallthru
          _
      $region12: #{nfivae_forward.1} parent=5 // pred_fallthru
        _
      %p255 = scmp.lt.s32.totalorder %s14, 2
      // Predicated region
      $region29: #{nfivae_forward.1} parent=5 // pred_check
        %p256 = pneg %p255
      $region30: #{nfivae_forward.1} parent=5 // pred_check_branch
        %258 = sbr.rel (%p256) target = $region32
      $region31: #{nfivae_forward.1} parent=5 // pred_region
        // Predicated region
        $region33: #{nfivae_forward.1} parent=31 // pred_check
          %p259 = pneg %p34
        $region34: #{nfivae_forward.1} parent=31 // pred_check_branch
          %261 = sbr.rel (%p259) target = $region36
        $region35: #{nfivae_forward.1} parent=31 // pred_region
          %s262 = sand.u32 %s24, 1
          %s263 = sand.u32 %s24, 1
          %s264 = smul.addr %s263, 16
          %s265 = scalar_lea.vmem [#allocation2], %s264
          %s266 = smul.addr %s14, 8
          %s267 = scalar_lea.vmem %s0, %s266
          // Predicated region
          $region37: #{nfivae_forward.1} parent=35 // pred_check
            _
          $region38: #{nfivae_forward.1} parent=35 // pred_check_branch
            %269 = sbr.rel (0) target = $region40
          $region39: #{nfivae_forward.1} parent=35 // pred_region
            // Predicated region
            $region41: #{nfivae_forward.1} parent=39 // pred_check
              _
            $region42: #{nfivae_forward.1} parent=39 // pred_check_branch
              %271 = sbr.rel (0) target = $region44
            $region43: #{nfivae_forward.1} parent=39 // pred_region
              // Predicated region
              $region56: #{nfivae_forward.1} parent=43 // pred_check
                _
              $region57: #{nfivae_forward.1} parent=43 // pred_check_branch
                %288 = sbr.rel (0) target = $region59
              $region58: #{nfivae_forward.1} parent=43 // pred_region
                loop: start=0, step=1, limit=1
                $region60: #{nfivae_forward.1} parent=58 // loop_pre_header
                  _
                $region61: #{nfivae_forward.1} parent=58 // loop_header
                  %s290 = sphi 0, %s294
                  %p291 = scmp.ge.s32.totalorder %s290, 1
                  %s295 = sphi %s267, %s267
                  %s296 = sphi %s265, %s265
                $region62: #{nfivae_forward.1} parent=58 // loop_header_branch
                  %293 = sbr.rel (%p291) target = $region66
                $region63: #{nfivae_forward.1} parent=58 // loop_body
                  %v297 = vld [vmem:[%s295] sm:$0xff]
                  %298 = vst [vmem:[%s296] sm:$0xff] %v297
                  %v299 = vld [vmem:[%s295 + $0x10] sm:$0xff]
                  %300 = vst [vmem:[%s296 + $0x8] sm:$0xff] %v299
                $region64: #{nfivae_forward.1} parent=58 // loop_footer
                  %s294 = sadd.s32 1, %s290
                $region65: #{nfivae_forward.1} parent=58 // loop_footer_branch
                  %289 = sbr.rel target = $region61
                $region66: #{nfivae_forward.1} parent=58 // loop_exit
                  _
              $region59: #{nfivae_forward.1} parent=43 // pred_fallthru
                _
              // Predicated region
              $region67: #{nfivae_forward.1} parent=43 // pred_check
                _
              $region68: #{nfivae_forward.1} parent=43 // pred_check_branch
                %302 = sbr.rel target = $region70
              $region69: #{nfivae_forward.1} parent=43 // pred_region
                _
              $region70: #{nfivae_forward.1} parent=43 // pred_fallthru
                _
            $region44: #{nfivae_forward.1} parent=39 // pred_fallthru
              _
            // Predicated region
            $region45: #{nfivae_forward.1} parent=39 // pred_check
              _
            $region46: #{nfivae_forward.1} parent=39 // pred_check_branch
              %273 = sbr.rel target = $region48
            $region47: #{nfivae_forward.1} parent=39 // pred_region
              loop: start=0, step=1, limit=1
              $region49: #{nfivae_forward.1} parent=47 // loop_pre_header
                _
              $region50: #{nfivae_forward.1} parent=47 // loop_header
                %s276 = sphi 0, %s280
                %p277 = scmp.ge.s32.totalorder %s276, 1
                %s281 = sphi %s267, %s267
                %s282 = sphi %s265, %s265
              $region51: #{nfivae_forward.1} parent=47 // loop_header_branch
                %279 = sbr.rel (%p277) target = $region55
              $region52: #{nfivae_forward.1} parent=47 // loop_body
                %v283 = vld [vmem:[%s281] sm:$0xff]
                %284 = vst [vmem:[%s282] sm:$0xff] %v283
                %v285 = vld [vmem:[%s281 + $0x10] sm:$0xff]
                %286 = vst [vmem:[%s282 + $0x8] sm:$0xff] %v285
              $region53: #{nfivae_forward.1} parent=47 // loop_footer
                %s280 = sadd.s32 1, %s276
              $region54: #{nfivae_forward.1} parent=47 // loop_footer_branch
                %275 = sbr.rel target = $region50
              $region55: #{nfivae_forward.1} parent=47 // loop_exit
                _
            $region48: #{nfivae_forward.1} parent=39 // pred_fallthru
              _
          $region40: #{nfivae_forward.1} parent=35 // pred_fallthru
            _
          %303 = vnop
        $region36: #{nfivae_forward.1} parent=31 // pred_fallthru
          _
        // Predicated region
        $region71: #{nfivae_forward.1} parent=31 // pred_check
          %p304 = pneg %p60
        $region72: #{nfivae_forward.1} parent=31 // pred_check_branch
          %306 = sbr.rel (%p304) target = $region74
        $region73: #{nfivae_forward.1} parent=31 // pred_region
          %p307 = scmp.lt.s32.totalorder %s14, 1
          %s308 = scalar_select %p307, %s14, 1
          %s309 = scalar_lea.vmem %s1, %s308
        $region74: #{nfivae_forward.1} parent=31 // pred_fallthru
          _
        // Predicated region
        $region75: #{nfivae_forward.1} parent=31 // pred_check
          %p310 = pneg %p86
        $region76: #{nfivae_forward.1} parent=31 // pred_check_branch
          %312 = sbr.rel (%p310) target = $region78
        $region77: #{nfivae_forward.1} parent=31 // pred_region
          %p313 = scmp.lt.s32.totalorder %s14, 1
          %s314 = scalar_select %p313, %s14, 1
          %s315 = smul.addr %s314, 4
          %s316 = scalar_lea.vmem %s2, %s315
        $region78: #{nfivae_forward.1} parent=31 // pred_fallthru
          _
        // Predicated region
        $region79: #{nfivae_forward.1} parent=31 // pred_check
          %p317 = pneg %p112
        $region80: #{nfivae_forward.1} parent=31 // pred_check_branch
          %319 = sbr.rel (%p317) target = $region82
        $region81: #{nfivae_forward.1} parent=31 // pred_region
          %p320 = scmp.lt.s32.totalorder %s14, 1
          %s321 = scalar_select %p320, %s14, 1
          %s322 = smul.addr %s321, 4
          %s323 = scalar_lea.vmem %s3, %s322
        $region82: #{nfivae_forward.1} parent=31 // pred_fallthru
          _
      $region32: #{nfivae_forward.1} parent=5 // pred_fallthru
        _
      %p324 = scmp.le.s32.totalorder 1, %s14
      %p325 = scmp.lt.s32.totalorder %s14, 3
      %p326 = pnand %p324, %p325
      %p327 = pneg %p326
      // Predicated region
      $region83: #{nfivae_forward.1} parent=5 // pred_check
        _
      $region84: #{nfivae_forward.1} parent=5 // pred_check_branch
        %329 = sbr.rel (%p326) target = $region86
      $region85: #{nfivae_forward.1} parent=5 // pred_region
        %s330 = ssub.s32 %s14, 1
        %s331 = sand.u32 %s27, 1
        %s332 = sand.u32 %s27, 1
        %s333 = smul.addr %s332, 16
        %s334 = scalar_lea.vmem [#allocation2], %s333
        // Predicated region
        $region87: #{nfivae_forward.1} parent=85 // pred_check
          %p335 = pneg %p40
        $region88: #{nfivae_forward.1} parent=85 // pred_check_branch
          %337 = sbr.rel (%p335) target = $region90
        $region89: #{nfivae_forward.1} parent=85 // pred_region
          _
        $region90: #{nfivae_forward.1} parent=85 // pred_fallthru
          _
        %s338 = sand.u32 %s27, 1
        %s339 = sand.u32 %s27, 1
        %s340 = smul.addr %s339, 16
        %s341 = scalar_lea.vmem [#allocation2], %s340
        %p342 = pneg %p40
        %p343 = pneg %p37
        %p344 = scmp.lt.s32.totalorder %s19, 1
        %s345 = scalar_select %p344, %s19, 1
        %s346 = scalar_lea.vmem %s1, %s345
        %p347 = pneg %p66
        %p348 = pneg %p63
        %p349 = scmp.lt.s32.totalorder %s19, 1
        %s350 = scalar_select %p349, %s19, 1
        %s351 = smul.addr %s350, 4
        %s352 = scalar_lea.vmem %s2, %s351
        %p353 = pneg %p92
        %p354 = pneg %p89
        %p355 = scmp.lt.s32.totalorder %s19, 1
        %s356 = scalar_select %p355, %s19, 1
        %s357 = smul.addr %s356, 4
        %s358 = scalar_lea.vmem %s3, %s357
        %p359 = pneg %p118
        %p360 = pneg %p115
        %p361 = pneg %p139
        %p362 = pneg %p136
        %p363 = pneg %p160
        %p364 = pneg %p157
        %p365 = pneg %p181
        %p366 = pneg %p178
        %p367 = pneg %p202
        %p368 = pneg %p199
        %p369 = pneg %p228
        %p370 = pneg %p225
        %s371 = sand.u32 %s215, 1
        %s372 = sand.u32 %s215, 1
        %s373 = smul.addr %s372, 24
        %s374 = scalar_lea.vmem [#allocation3], %s373
        %p375 = scmp.lt.s32.totalorder %s19, 1
        %s376 = scalar_select %p375, %s19, 1
        %s377 = scalar_lea.vmem %s1, %s376
        %p378 = scmp.lt.s32.totalorder %s19, 1
        %s379 = scalar_select %p378, %s19, 1
        %s380 = smul.addr %s379, 4
        %s381 = scalar_lea.vmem %s2, %s380
        %p382 = scmp.lt.s32.totalorder %s19, 1
        %s383 = scalar_select %p382, %s19, 1
        %s384 = smul.addr %s383, 4
        %s385 = scalar_lea.vmem %s3, %s384
        %v386 = vld [vmem:[%s4] sm:$0x3f]
        %v387 = vld [vmem:[%s334] sm:$0xff]
        %v388 = vld [vmem:[%s334 + $0x8] sm:$0x3]
        %v389 = vld [vmem:[%s377] sm:$0x1]
        %391 = vset.pattern.permute.xlu0 10
        %392 = vperm.xlu0 %391, %v386
        %v393 = vpop.permute.xlu0 %392
        %v396 = vlaneseq
        %v397 = vshrl.u32 %v396, 7
        %v398 = vsub.s32 0, %v397
        %v399 = vrot.slane %v389, %v398
        %v401 = vmul.f32 %v393, %v399
        %vm402 = vcmask 80896
        %v403 = vsel %vm402, %v386, 0
        %vm405 = vcmask 1041408
        %v407 = vsel %vm405, %v388, 0
        %409 = vmatprep.subr.mxu0 0.0
        %410 = vmatpush1.msra.mxu0 %v387
        %411 = vmatprep.subr.mxu0 0.0
        %412 = vmatpush1.msra.mxu0 %v407
        %413 = vmatprep.subr.mxu0 0.0
        %414 = vmatpush1.msra.mxu0 0.0
        %415 = vmatprep.subr.mxu0 0.0
        %416 = vmatpush1.msra.mxu0 0.0
        %417 = vmatprep.subr.mxu0 0.0
        %418 = vmatpush1.msra.mxu0 0.0
        %419 = vmatprep.subr.mxu0 0.0
        %420 = vmatpush1.msra.mxu0 0.0
        %421 = vmatprep.subr.mxu0 0.0
        %422 = vmatpush1.msra.mxu0 0.0
        %423 = vmatprep.subr.mxu0 0.0
        %424 = vmatpush1.msra.mxu0 0.0
        %425 = vmatprep.subr.mxu0 0.0
        %426 = vmatpush1.msra.mxu0 0.0
        %427 = vmatprep.subr.mxu0 0.0
        %428 = vmatpush1.msra.mxu0 0.0
        %429 = vmatprep.subr.mxu0 0.0
        %430 = vmatpush1.msra.mxu0 0.0
        %431 = vmatprep.subr.mxu0 0.0
        %432 = vmatpush1.msra.mxu0 0.0
        %433 = vmatprep.subr.mxu0 0.0
        %434 = vmatpush1.msra.mxu0 0.0
        %435 = vmatprep.subr.mxu0 0.0
        %436 = vmatpush1.msra.mxu0 0.0
        %437 = vmatprep.subr.mxu0 0.0
        %438 = vmatpush1.msra.mxu0 0.0
        %439 = vmatprep.subr.mxu0 0.0
        %440 = vmatpush1.msra.mxu0 0.0
        %441 = vmatprep.subr.mxu0 0.0
        %442 = vmatpush1.msra.mxu0 0.0
        %443 = vmatprep.subr.mxu0 0.0
        %444 = vmatpush1.msra.mxu0 0.0
        %445 = vmatprep.subr.mxu0 0.0
        %446 = vmatpush1.msra.mxu0 0.0
        %447 = vmatprep.subr.mxu0 0.0
        %448 = vmatpush1.msra.mxu0 0.0
        %449 = vmatprep.subr.mxu0 0.0
        %450 = vmatpush1.msra.mxu0 0.0
        %451 = vmatprep.subr.mxu0 0.0
        %452 = vmatpush1.msra.mxu0 0.0
        %453 = vmatprep.subr.mxu0 0.0
        %454 = vmatpush1.msra.mxu0 0.0
        %455 = vmatprep.subr.mxu0 0.0
        %456 = vmatpush1.msra.mxu0 0.0
        %457 = vmatprep.subr.mxu0 0.0
        %458 = vmatpush1.msra.mxu0 0.0
        %459 = vmatprep.subr.mxu0 0.0
        %460 = vmatpush1.msra.mxu0 0.0
        %461 = vmatprep.subr.mxu0 0.0
        %462 = vmatpush1.msra.mxu0 0.0
        %463 = vmatprep.subr.mxu0 0.0
        %464 = vmatpush1.msra.mxu0 0.0
        %465 = vmatprep.subr.mxu0 0.0
        %466 = vmatpush1.msra.mxu0 0.0
        %467 = vmatprep.subr.mxu0 0.0
        %468 = vmatpush1.msra.mxu0 0.0
        %469 = vmatprep.subr.mxu0 0.0
        %470 = vmatpush1.msra.mxu0 0.0
        %471 = vmatprep.subr.mxu0 0.0
        %472 = vmatpush1.msra.mxu0 0.0
        %473 = vmatprep.mubr.f32.mxu0 0.0
        %474 = vmatmul.mubr.f32.gmra.mrb[0].mxu0 %v403
        %v475 = vpop.f32.mrb[0].mxu0
        %v476 = vadd.f32 %v401, %v475
        %v477 = vpop.f32.mrb[0].mxu0
        %478 = vdwg.mxu0
        %v479 = vld [vmem:[%s381] sm:$0xf]
        %480 = vrot.lane.b32.xlu0 %v386, 117
        %v481 = vpop.permute.xlu0 %480
        %vm482 = vcmask 31744
        %v483 = vsel %vm482, %v481, 0
        %vm485 = vcmask 1043456
        %v487 = vsel %vm485, %v479, 0
        %489 = vmatprep.subr.mxu0 0.0
        %490 = vmatpush1.msra.mxu0 %v487
        %491 = vmatprep.subr.mxu0 0.0
        %492 = vmatpush1.msra.mxu0 0.0
        %493 = vmatprep.subr.mxu0 0.0
        %494 = vmatpush1.msra.mxu0 0.0
        %495 = vmatprep.subr.mxu0 0.0
        %496 = vmatpush1.msra.mxu0 0.0
        %497 = vmatprep.subr.mxu0 0.0
        %498 = vmatpush1.msra.mxu0 0.0
        %499 = vmatprep.subr.mxu0 0.0
        %500 = vmatpush1.msra.mxu0 0.0
        %501 = vmatprep.subr.mxu0 0.0
        %502 = vmatpush1.msra.mxu0 0.0
        %503 = vmatprep.subr.mxu0 0.0
        %504 = vmatpush1.msra.mxu0 0.0
        %505 = vmatprep.subr.mxu0 0.0
        %506 = vmatpush1.msra.mxu0 0.0
        %507 = vmatprep.subr.mxu0 0.0
        %508 = vmatpush1.msra.mxu0 0.0
        %509 = vmatprep.subr.mxu0 0.0
        %510 = vmatpush1.msra.mxu0 0.0
        %511 = vmatprep.subr.mxu0 0.0
        %512 = vmatpush1.msra.mxu0 0.0
        %513 = vmatprep.subr.mxu0 0.0
        %514 = vmatpush1.msra.mxu0 0.0
        %515 = vmatprep.subr.mxu0 0.0
        %516 = vmatpush1.msra.mxu0 0.0
        %517 = vmatprep.subr.mxu0 0.0
        %518 = vmatpush1.msra.mxu0 0.0
        %519 = vmatprep.subr.mxu0 0.0
        %520 = vmatpush1.msra.mxu0 0.0
        %521 = vmatprep.subr.mxu0 0.0
        %522 = vmatpush1.msra.mxu0 0.0
        %523 = vmatprep.subr.mxu0 0.0
        %524 = vmatpush1.msra.mxu0 0.0
        %525 = vmatprep.subr.mxu0 0.0
        %526 = vmatpush1.msra.mxu0 0.0
        %527 = vmatprep.subr.mxu0 0.0
        %528 = vmatpush1.msra.mxu0 0.0
        %529 = vmatprep.subr.mxu0 0.0
        %530 = vmatpush1.msra.mxu0 0.0
        %531 = vmatprep.subr.mxu0 0.0
        %532 = vmatpush1.msra.mxu0 0.0
        %533 = vmatprep.subr.mxu0 0.0
        %534 = vmatpush1.msra.mxu0 0.0
        %535 = vmatprep.subr.mxu0 0.0
        %536 = vmatpush1.msra.mxu0 0.0
        %537 = vmatprep.subr.mxu0 0.0
        %538 = vmatpush1.msra.mxu0 0.0
        %539 = vmatprep.subr.mxu0 0.0
        %540 = vmatpush1.msra.mxu0 0.0
        %541 = vmatprep.subr.mxu0 0.0
        %542 = vmatpush1.msra.mxu0 0.0
        %543 = vmatprep.subr.mxu0 0.0
        %544 = vmatpush1.msra.mxu0 0.0
        %545 = vmatprep.subr.mxu0 0.0
        %546 = vmatpush1.msra.mxu0 0.0
        %547 = vmatprep.subr.mxu0 0.0
        %548 = vmatpush1.msra.mxu0 0.0
        %549 = vmatprep.subr.mxu0 0.0
        %550 = vmatpush1.msra.mxu0 0.0
        %551 = vmatprep.subr.mxu0 0.0
        %552 = vmatpush1.msra.mxu0 0.0
        %553 = vmatprep.mubr.f32.mxu0 0.0
        %554 = vmatmul.mubr.f32.gmra.mrb[0].mxu0 %v483
        %v555 = vpop.f32.mrb[0].mxu0
        %v556 = vadd.f32 0.0, %v555
        %v557 = vpop.f32.mrb[0].mxu0
        %558 = vdwg.mxu0
        %v559 = vadd.f32 %v476, %v556
        %560 = vset.pattern.permute.xlu0 15
        %561 = vperm.xlu0 %560, %v386
        %v562 = vpop.permute.xlu0 %561
        %v564 = vadd.f32 %v559, %v562
        %v565 = vmax.f32 %v564, 0.0
        %v566 = vld [vmem:[%s5] sm:$0xff]
        %568 = vset.pattern.permute.xlu0 6
        %569 = vperm.xlu0 %568, %v566
        %v570 = vpop.permute.xlu0 %569
        %vm572 = vcmask 48128
        %v573 = vsel %vm572, %v566, 0
        %vm575 = vcmask 1045504
        %v577 = vsel %vm575, %v565, 0
        %579 = vmatprep.subr.mxu0 0.0
        %580 = vmatpush1.msra.mxu0 %v577
        %581 = vmatprep.subr.mxu0 0.0
        %582 = vmatpush1.msra.mxu0 0.0
        %583 = vmatprep.subr.mxu0 0.0
        %584 = vmatpush1.msra.mxu0 0.0
        %585 = vmatprep.subr.mxu0 0.0
        %586 = vmatpush1.msra.mxu0 0.0
        %587 = vmatprep.subr.mxu0 0.0
        %588 = vmatpush1.msra.mxu0 0.0
        %589 = vmatprep.subr.mxu0 0.0
        %590 = vmatpush1.msra.mxu0 0.0
        %591 = vmatprep.subr.mxu0 0.0
        %592 = vmatpush1.msra.mxu0 0.0
        %593 = vmatprep.subr.mxu0 0.0
        %594 = vmatpush1.msra.mxu0 0.0
        %595 = vmatprep.subr.mxu0 0.0
        %596 = vmatpush1.msra.mxu0 0.0
        %597 = vmatprep.subr.mxu0 0.0
        %598 = vmatpush1.msra.mxu0 0.0
        %599 = vmatprep.subr.mxu0 0.0
        %600 = vmatpush1.msra.mxu0 0.0
        %601 = vmatprep.subr.mxu0 0.0
        %602 = vmatpush1.msra.mxu0 0.0
        %603 = vmatprep.subr.mxu0 0.0
        %604 = vmatpush1.msra.mxu0 0.0
        %605 = vmatprep.subr.mxu0 0.0
        %606 = vmatpush1.msra.mxu0 0.0
        %607 = vmatprep.subr.mxu0 0.0
        %608 = vmatpush1.msra.mxu0 0.0
        %609 = vmatprep.subr.mxu0 0.0
        %610 = vmatpush1.msra.mxu0 0.0
        %611 = vmatprep.subr.mxu0 0.0
        %612 = vmatpush1.msra.mxu0 0.0
        %613 = vmatprep.subr.mxu0 0.0
        %614 = vmatpush1.msra.mxu0 0.0
        %615 = vmatprep.subr.mxu0 0.0
        %616 = vmatpush1.msra.mxu0 0.0
        %617 = vmatprep.subr.mxu0 0.0
        %618 = vmatpush1.msra.mxu0 0.0
        %619 = vmatprep.subr.mxu0 0.0
        %620 = vmatpush1.msra.mxu0 0.0
        %621 = vmatprep.subr.mxu0 0.0
        %622 = vmatpush1.msra.mxu0 0.0
        %623 = vmatprep.subr.mxu0 0.0
        %624 = vmatpush1.msra.mxu0 0.0
        %625 = vmatprep.subr.mxu0 0.0
        %626 = vmatpush1.msra.mxu0 0.0
        %627 = vmatprep.subr.mxu0 0.0
        %628 = vmatpush1.msra.mxu0 0.0
        %629 = vmatprep.subr.mxu0 0.0
        %630 = vmatpush1.msra.mxu0 0.0
        %631 = vmatprep.subr.mxu0 0.0
        %632 = vmatpush1.msra.mxu0 0.0
        %633 = vmatprep.subr.mxu0 0.0
        %634 = vmatpush1.msra.mxu0 0.0
        %635 = vmatprep.subr.mxu0 0.0
        %636 = vmatpush1.msra.mxu0 0.0
        %637 = vmatprep.subr.mxu0 0.0
        %638 = vmatpush1.msra.mxu0 0.0
        %639 = vmatprep.subr.mxu0 0.0
        %640 = vmatpush1.msra.mxu0 0.0
        %641 = vmatprep.subr.mxu0 0.0
        %642 = vmatpush1.msra.mxu0 0.0
        %643 = vmatprep.mubr.f32.mxu0 0.0
        %644 = vmatmul.mubr.f32.gmra.mrb[0].mxu0 %v573
        %v645 = vpop.f32.mrb[0].mxu0
        %v646 = vadd.f32 %v570, %v645
        %v647 = vpop.f32.mrb[0].mxu0
        %648 = vdwg.mxu0
        %v649 = vmul.f32 %v646, 1.442695
        %v650 = vpow.pop %v649
        %v651 = vld [vmem:[%s385] sm:$0xf]
        %v653 = vrot.slane %v651, 4
        %v655 = vmul.f32 %v650, %v653
        %v657 = vrot.slane %v655, 4
        %v659 = vadd.f32 %v646, %v657
        %v660 = vld [vmem:[%s6] sm:$0x3f]
        %662 = vset.pattern.permute.xlu0 4
        %663 = vperm.xlu0 %662, %v660
        %v664 = vpop.permute.xlu0 %663
        %v666 = vsel %vm482, %v660, 0
        %v669 = vsel %vm485, %v659, 0
        %671 = vmatprep.subr.mxu0 0.0
        %672 = vmatpush1.msra.mxu0 %v669
        %673 = vmatprep.subr.mxu0 0.0
        %674 = vmatpush1.msra.mxu0 0.0
        %675 = vmatprep.subr.mxu0 0.0
        %676 = vmatpush1.msra.mxu0 0.0
        %677 = vmatprep.subr.mxu0 0.0
        %678 = vmatpush1.msra.mxu0 0.0
        %679 = vmatprep.subr.mxu0 0.0
        %680 = vmatpush1.msra.mxu0 0.0
        %681 = vmatprep.subr.mxu0 0.0
        %682 = vmatpush1.msra.mxu0 0.0
        %683 = vmatprep.subr.mxu0 0.0
        %684 = vmatpush1.msra.mxu0 0.0
        %685 = vmatprep.subr.mxu0 0.0
        %686 = vmatpush1.msra.mxu0 0.0
        %687 = vmatprep.subr.mxu0 0.0
        %688 = vmatpush1.msra.mxu0 0.0
        %689 = vmatprep.subr.mxu0 0.0
        %690 = vmatpush1.msra.mxu0 0.0
        %691 = vmatprep.subr.mxu0 0.0
        %692 = vmatpush1.msra.mxu0 0.0
        %693 = vmatprep.subr.mxu0 0.0
        %694 = vmatpush1.msra.mxu0 0.0
        %695 = vmatprep.subr.mxu0 0.0
        %696 = vmatpush1.msra.mxu0 0.0
        %697 = vmatprep.subr.mxu0 0.0
        %698 = vmatpush1.msra.mxu0 0.0
        %699 = vmatprep.subr.mxu0 0.0
        %700 = vmatpush1.msra.mxu0 0.0
        %701 = vmatprep.subr.mxu0 0.0
        %702 = vmatpush1.msra.mxu0 0.0
        %703 = vmatprep.subr.mxu0 0.0
        %704 = vmatpush1.msra.mxu0 0.0
        %705 = vmatprep.subr.mxu0 0.0
        %706 = vmatpush1.msra.mxu0 0.0
        %707 = vmatprep.subr.mxu0 0.0
        %708 = vmatpush1.msra.mxu0 0.0
        %709 = vmatprep.subr.mxu0 0.0
        %710 = vmatpush1.msra.mxu0 0.0
        %711 = vmatprep.subr.mxu0 0.0
        %712 = vmatpush1.msra.mxu0 0.0
        %713 = vmatprep.subr.mxu0 0.0
        %714 = vmatpush1.msra.mxu0 0.0
        %715 = vmatprep.subr.mxu0 0.0
        %716 = vmatpush1.msra.mxu0 0.0
        %717 = vmatprep.subr.mxu0 0.0
        %718 = vmatpush1.msra.mxu0 0.0
        %719 = vmatprep.subr.mxu0 0.0
        %720 = vmatpush1.msra.mxu0 0.0
        %721 = vmatprep.subr.mxu0 0.0
        %722 = vmatpush1.msra.mxu0 0.0
        %723 = vmatprep.subr.mxu0 0.0
        %724 = vmatpush1.msra.mxu0 0.0
        %725 = vmatprep.subr.mxu0 0.0
        %726 = vmatpush1.msra.mxu0 0.0
        %727 = vmatprep.subr.mxu0 0.0
        %728 = vmatpush1.msra.mxu0 0.0
        %729 = vmatprep.subr.mxu0 0.0
        %730 = vmatpush1.msra.mxu0 0.0
        %731 = vmatprep.subr.mxu0 0.0
        %732 = vmatpush1.msra.mxu0 0.0
        %733 = vmatprep.subr.mxu0 0.0
        %734 = vmatpush1.msra.mxu0 0.0
        %735 = vmatprep.mubr.f32.mxu0 0.0
        %736 = vmatmul.mubr.f32.gmra.mrb[0].mxu0 %v666
        %v737 = vpop.f32.mrb[0].mxu0
        %v738 = vadd.f32 %v664, %v737
        %v739 = vpop.f32.mrb[0].mxu0
        %740 = vdwg.mxu0
        %v741 = vmax.f32 %v738, 0.0
        %v742 = vld [vmem:[%s7] sm:$0xff]
        %v743 = vld [vmem:[%s7 + $0x8] sm:$0x3]
        %745 = vset.pattern.permute.xlu0 6
        %746 = vperm.xlu0 %745, %v742
        %v747 = vpop.permute.xlu0 %746
        %750 = vset.pattern.permute.xlu0 6
        %751 = vperm.xlu0 %750, %v743
        %v752 = vpop.permute.xlu0 %751
        %v754 = vsel %vm572, %v742, 0
        %v756 = vsel %vm572, %v743, 0
        %v759 = vsel %vm575, %v741, 0
        %761 = vmatprep.subr.mxu0 0.0
        %762 = vmatpush1.msra.mxu0 %v759
        %763 = vmatprep.subr.mxu0 0.0
        %764 = vmatpush1.msra.mxu0 0.0
        %765 = vmatprep.subr.mxu0 0.0
        %766 = vmatpush1.msra.mxu0 0.0
        %767 = vmatprep.subr.mxu0 0.0
        %768 = vmatpush1.msra.mxu0 0.0
        %769 = vmatprep.subr.mxu0 0.0
        %770 = vmatpush1.msra.mxu0 0.0
        %771 = vmatprep.subr.mxu0 0.0
        %772 = vmatpush1.msra.mxu0 0.0
        %773 = vmatprep.subr.mxu0 0.0
        %774 = vmatpush1.msra.mxu0 0.0
        %775 = vmatprep.subr.mxu0 0.0
        %776 = vmatpush1.msra.mxu0 0.0
        %777 = vmatprep.subr.mxu0 0.0
        %778 = vmatpush1.msra.mxu0 0.0
        %779 = vmatprep.subr.mxu0 0.0
        %780 = vmatpush1.msra.mxu0 0.0
        %781 = vmatprep.subr.mxu0 0.0
        %782 = vmatpush1.msra.mxu0 0.0
        %783 = vmatprep.subr.mxu0 0.0
        %784 = vmatpush1.msra.mxu0 0.0
        %785 = vmatprep.subr.mxu0 0.0
        %786 = vmatpush1.msra.mxu0 0.0
        %787 = vmatprep.subr.mxu0 0.0
        %788 = vmatpush1.msra.mxu0 0.0
        %789 = vmatprep.subr.mxu0 0.0
        %790 = vmatpush1.msra.mxu0 0.0
        %791 = vmatprep.subr.mxu0 0.0
        %792 = vmatpush1.msra.mxu0 0.0
        %793 = vmatprep.subr.mxu0 0.0
        %794 = vmatpush1.msra.mxu0 0.0
        %795 = vmatprep.subr.mxu0 0.0
        %796 = vmatpush1.msra.mxu0 0.0
        %797 = vmatprep.subr.mxu0 0.0
        %798 = vmatpush1.msra.mxu0 0.0
        %799 = vmatprep.subr.mxu0 0.0
        %800 = vmatpush1.msra.mxu0 0.0
        %801 = vmatprep.subr.mxu0 0.0
        %802 = vmatpush1.msra.mxu0 0.0
        %803 = vmatprep.subr.mxu0 0.0
        %804 = vmatpush1.msra.mxu0 0.0
        %805 = vmatprep.subr.mxu0 0.0
        %806 = vmatpush1.msra.mxu0 0.0
        %807 = vmatprep.subr.mxu0 0.0
        %808 = vmatpush1.msra.mxu0 0.0
        %809 = vmatprep.subr.mxu0 0.0
        %810 = vmatpush1.msra.mxu0 0.0
        %811 = vmatprep.subr.mxu0 0.0
        %812 = vmatpush1.msra.mxu0 0.0
        %813 = vmatprep.subr.mxu0 0.0
        %814 = vmatpush1.msra.mxu0 0.0
        %815 = vmatprep.subr.mxu0 0.0
        %816 = vmatpush1.msra.mxu0 0.0
        %817 = vmatprep.subr.mxu0 0.0
        %818 = vmatpush1.msra.mxu0 0.0
        %819 = vmatprep.subr.mxu0 0.0
        %820 = vmatpush1.msra.mxu0 0.0
        %821 = vmatprep.subr.mxu0 0.0
        %822 = vmatpush1.msra.mxu0 0.0
        %823 = vmatprep.subr.mxu0 0.0
        %824 = vmatpush1.msra.mxu0 0.0
        %825 = vmatprep.mubr.f32.mxu0 0.0
        %826 = vmatmul.mubr.f32.gmra.mrb[0].mxu0 %v754
        %v827 = vpop.f32.mrb[0].mxu0
        %v828 = vadd.f32 %v747, %v827
        %v829 = vpop.f32.mrb[0].mxu0
        %830 = vmatprep.mubr.f32.mxu0 0.0
        %831 = vmatmul.mubr.f32.gmra.mrb[0].mxu0 %v756
        %v832 = vpop.f32.mrb[0].mxu0
        %v833 = vadd.f32 %v752, %v832
        %v834 = vpop.f32.mrb[0].mxu0
        %835 = vdwg.mxu0
        %836 = vst [vmem:[%s374] sm:$0xf] %v646
        %837 = vst [vmem:[%s374] sm:$0xf0] %v650
        %838 = vst [vmem:[%s374 + $0x8] sm:$0xf] %v659
        %839 = vst [vmem:[%s374 + $0xc] sm:$0xff] %v828
        %840 = vst [vmem:[%s374 + $0x14] sm:$0x3] %v833
        %s841 = sand.u32 %s215, 1
        %s842 = sand.u32 %s215, 1
        %s843 = smul.addr %s842, 24
        %s844 = scalar_lea.vmem [#allocation3], %s843
        // Predicated region
        $region91: #{nfivae_forward.1} parent=85 // pred_check
          %p845 = pneg %p225
        $region92: #{nfivae_forward.1} parent=85 // pred_check_branch
          %847 = sbr.rel (%p845) target = $region94
        $region93: #{nfivae_forward.1} parent=85 // pred_region
          %s848 = smul.addr %s19, 8
          %s849 = scalar_lea.vmem %s8, %s848
          // Predicated region
          $region95: #{nfivae_forward.1} parent=93 // pred_check
            _
          $region96: #{nfivae_forward.1} parent=93 // pred_check_branch
            %851 = sbr.rel (0) target = $region98
          $region97: #{nfivae_forward.1} parent=93 // pred_region
            // Predicated region
            $region99: #{nfivae_forward.1} parent=97 // pred_check
              _
            $region100: #{nfivae_forward.1} parent=97 // pred_check_branch
              %853 = sbr.rel (0) target = $region102
            $region101: #{nfivae_forward.1} parent=97 // pred_region
              // Predicated region
              $region114: #{nfivae_forward.1} parent=101 // pred_check
                _
              $region115: #{nfivae_forward.1} parent=101 // pred_check_branch
                %872 = sbr.rel (0) target = $region117
              $region116: #{nfivae_forward.1} parent=101 // pred_region
                loop: start=0, step=1, limit=1
                $region118: #{nfivae_forward.1} parent=116 // loop_pre_header
                  _
                $region119: #{nfivae_forward.1} parent=116 // loop_header
                  %s874 = sphi 0, %s878
                  %p875 = scmp.ge.s32.totalorder %s874, 1
                  %s879 = sphi %s844, %s844
                  %s880 = sphi %s849, %s849
                $region120: #{nfivae_forward.1} parent=116 // loop_header_branch
                  %877 = sbr.rel (%p875) target = $region124
                $region121: #{nfivae_forward.1} parent=116 // loop_body
                  %v881 = vld [vmem:[%s879] sm:$0xff]
                  %882 = vst [vmem:[%s880] sm:$0xff] %v881
                  %v883 = vld [vmem:[%s879 + $0x8] sm:$0xff]
                  %884 = vst [vmem:[%s880 + $0x10] sm:$0xff] %v883
                  %v885 = vld [vmem:[%s879 + $0x10] sm:$0xff]
                  %886 = vst [vmem:[%s880 + $0x20] sm:$0xff] %v885
                $region122: #{nfivae_forward.1} parent=116 // loop_footer
                  %s878 = sadd.s32 1, %s874
                $region123: #{nfivae_forward.1} parent=116 // loop_footer_branch
                  %873 = sbr.rel target = $region119
                $region124: #{nfivae_forward.1} parent=116 // loop_exit
                  _
              $region117: #{nfivae_forward.1} parent=101 // pred_fallthru
                _
              // Predicated region
              $region125: #{nfivae_forward.1} parent=101 // pred_check
                _
              $region126: #{nfivae_forward.1} parent=101 // pred_check_branch
                %888 = sbr.rel target = $region128
              $region127: #{nfivae_forward.1} parent=101 // pred_region
                _
              $region128: #{nfivae_forward.1} parent=101 // pred_fallthru
                _
            $region102: #{nfivae_forward.1} parent=97 // pred_fallthru
              _
            // Predicated region
            $region103: #{nfivae_forward.1} parent=97 // pred_check
              _
            $region104: #{nfivae_forward.1} parent=97 // pred_check_branch
              %855 = sbr.rel target = $region106
            $region105: #{nfivae_forward.1} parent=97 // pred_region
              loop: start=0, step=1, limit=1
              $region107: #{nfivae_forward.1} parent=105 // loop_pre_header
                _
              $region108: #{nfivae_forward.1} parent=105 // loop_header
                %s858 = sphi 0, %s862
                %p859 = scmp.ge.s32.totalorder %s858, 1
                %s863 = sphi %s844, %s844
                %s864 = sphi %s849, %s849
              $region109: #{nfivae_forward.1} parent=105 // loop_header_branch
                %861 = sbr.rel (%p859) target = $region113
              $region110: #{nfivae_forward.1} parent=105 // loop_body
                %v865 = vld [vmem:[%s863] sm:$0xff]
                %866 = vst [vmem:[%s864] sm:$0xff] %v865
                %v867 = vld [vmem:[%s863 + $0x8] sm:$0xff]
                %868 = vst [vmem:[%s864 + $0x10] sm:$0xff] %v867
                %v869 = vld [vmem:[%s863 + $0x10] sm:$0xff]
                %870 = vst [vmem:[%s864 + $0x20] sm:$0xff] %v869
              $region111: #{nfivae_forward.1} parent=105 // loop_footer
                %s862 = sadd.s32 1, %s858
              $region112: #{nfivae_forward.1} parent=105 // loop_footer_branch
                %857 = sbr.rel target = $region108
              $region113: #{nfivae_forward.1} parent=105 // loop_exit
                _
            $region106: #{nfivae_forward.1} parent=97 // pred_fallthru
              _
          $region98: #{nfivae_forward.1} parent=93 // pred_fallthru
            _
          %889 = vnop
        $region94: #{nfivae_forward.1} parent=85 // pred_fallthru
          _
      $region86: #{nfivae_forward.1} parent=5 // pred_fallthru
        _
      %p890 = scmp.le.s32.totalorder 2, %s14
      // Predicated region
      $region129: #{nfivae_forward.1} parent=5 // pred_check
        %p891 = pneg %p890
      $region130: #{nfivae_forward.1} parent=5 // pred_check_branch
        %893 = sbr.rel (%p891) target = $region132
      $region131: #{nfivae_forward.1} parent=5 // pred_region
        %s894 = ssub.s32 %s14, 2
        // Predicated region
        $region133: #{nfivae_forward.1} parent=131 // pred_check
          %p895 = pneg %p231
        $region134: #{nfivae_forward.1} parent=131 // pred_check_branch
          %897 = sbr.rel (%p895) target = $region136
        $region135: #{nfivae_forward.1} parent=131 // pred_region
          %s898 = sand.u32 %s216, 1
          %s899 = sand.u32 %s216, 1
          %s900 = smul.addr %s899, 24
          %s901 = scalar_lea.vmem [#allocation3], %s900
        $region136: #{nfivae_forward.1} parent=131 // pred_fallthru
          _
      $region132: #{nfivae_forward.1} parent=5 // pred_fallthru
        _
    $region6: #{nfivae_forward.1} parent=1 // loop_footer
      %s18 = sadd.s32 1, %s14
    $region7: #{nfivae_forward.1} parent=1 // loop_footer_branch
      %13 = sbr.rel target = $region3
    $region8: #{nfivae_forward.1} parent=1 // loop_exit
      _

</llo_original>
